<compile_context>
chip_gen: v5e
topology: v5e:2x2
jax: 0.10.0
libtpu: 0.0.40
codegen_flags: <defaults>
</compile_context>

<pallas_src>
import math

import jax
import jax.numpy as jnp
from jax.experimental import pallas as pl
from jax.experimental.pallas import tpu as pltpu


def _round_up(x, m):
    return ((x + m - 1) // m) * m


# ---------------------------------------------------------------------------
# Kernel: flattened-sparsity tiled masked linear
#   grid = (M/tm, nnz); scalar-prefetched schedule arrays drive the index
#   maps.  f32 accumulator is zeroed on the first K step of each output tile
#   and written out (+bias) on the last K step of that tile.
# ---------------------------------------------------------------------------
def _autoreg_linear_kernel(jmap_ref, kmap_ref, kfirst_ref, klast_ref,
                           x_ref, wt_ref, b_ref, o_ref, acc_ref):
    t = pl.program_id(1)

    @pl.when(kfirst_ref[t] == 1)
    def _init():
        acc_ref[...] = jnp.zeros_like(acc_ref)

    # x: [tm, tk] @ wt: [tk, tn]  (weight pre-masked & pre-transposed once in
    # build; standard contraction -> MXU, lane dim of the result = output dim)
    acc_ref[...] += jnp.dot(x_ref[...], wt_ref[...],
                            preferred_element_type=jnp.float32)

    @pl.when(klast_ref[t] == 1)
    def _finalize():
        o_ref[...] = (acc_ref[...] + b_ref[...]).astype(o_ref.dtype)


# ---------------------------------------------------------------------------
# One-time build: pack weight/bias, compute the (j, k) sparsity schedule, and
# return a forward callable that only pads x and launches the kernel.
# ---------------------------------------------------------------------------
def build_autoreg_linear(weight, mask, bias, *, inp_per_var, out_per_var,
                         diagonal=False, compute_dtype=jnp.bfloat16,
                         out_dtype=None, batch_hint=None,
                         tm_cap=512, tn_cap=512, tk_cap=1024):
    out_f, in_f = weight.shape

    # ---- tile selection (static) ----
    tk = min(tk_cap, _round_up(in_f, 128))
    blk_k = _round_up(inp_per_var, 128)           # autoregressive K granularity
    if tk > blk_k:
        tk = max(blk_k, (tk // blk_k) * blk_k)
    tn = min(tn_cap, _round_up(out_f, 128))
    # v7x: if the whole batch fits one M tile, keep nj >= 2 so both cores work.
    if batch_hint is not None and _round_up(batch_hint, 16) <= tm_cap:
        if out_f >= 2 * 128:
            tn = min(tn, _round_up((out_f + 1) // 2, 128))

    Kp = _round_up(in_f, tk)
    Np = _round_up(out_f, tn)
    nj = Np // tn
    nk = Kp // tk

    # ---- one-time weight/bias packing (hoisted out of the forward path) ----
    w_masked = (weight * mask).astype(compute_dtype)
    wt_packed = jnp.zeros((Kp, Np), compute_dtype).at[:in_f, :out_f].set(w_masked.T)
    b_packed = jnp.zeros((1, Np), jnp.float32).at[0, :out_f].set(
        bias.astype(jnp.float32))

    # ---- static sparsity schedule over (j, k) weight tiles ----
    jmap, kmap, kfirst, klast = [], [], [], []
    for j in range(nj):
        last_col = min((j + 1) * tn, out_f) - 1
        out_var = last_col // out_per_var
        inp_end = (out_var + (1 if diagonal else 0)) * inp_per_var
        kcnt = -(-inp_end // tk) if inp_end > 0 else 0
        kcnt = max(1, min(kcnt, nk))   # >=1 so bias-only tiles still get written
        for kk in range(kcnt):
            jmap.append(j)
            kmap.append(kk)
            kfirst.append(1 if kk == 0 else 0)
            klast.append(1 if kk == kcnt - 1 else 0)
    jmap = jnp.asarray(jmap, jnp.int32)
    kmap = jnp.asarray(kmap, jnp.int32)
    kfirst = jnp.asarray(kfirst, jnp.int32)
    klast = jnp.asarray(klast, jnp.int32)
    nnz = int(jmap.shape[0])

    sub = max(8, 32 // jnp.dtype(compute_dtype).itemsize)  # 8 f32 / 16 bf16

    def apply(x):
        B = x.shape[0]
        odt = out_dtype if out_dtype is not None else x.dtype
        tm = min(tm_cap, _round_up(B, sub))
        Mp = _round_up(B, tm)
        ni = Mp // tm

        xc = x.astype(compute_dtype)
        if Mp != B or Kp != in_f:
            xp = jnp.zeros((Mp, Kp), compute_dtype).at[:B, :in_f].set(xc)
        else:
            xp = xc

        grid_spec = pltpu.PrefetchScalarGridSpec(
            num_scalar_prefetch=4,
            grid=(ni, nnz),
            in_specs=[
                pl.BlockSpec((tm, tk), lambda i, t, jm, km, kf, kl: (i, km[t])),
                pl.BlockSpec((tk, tn), lambda i, t, jm, km, kf, kl: (km[t], jm[t])),
                pl.BlockSpec((1, tn), lambda i, t, jm, km, kf, kl: (0, jm[t])),
            ],
            out_specs=pl.BlockSpec((tm, tn),
                                   lambda i, t, jm, km, kf, kl: (i, jm[t])),
            scratch_shapes=[pltpu.VMEM((tm, tn), jnp.float32)],
        )

        out = pl.pallas_call(
            _autoreg_linear_kernel,
            out_shape=jax.ShapeDtypeStruct((Mp, Np), odt),
            grid_spec=grid_spec,
            compiler_params=pltpu.CompilerParams(
                dimension_semantics=("parallel", "arbitrary")),
        )(jmap, kmap, kfirst, klast, xp, wt_packed, b_packed)

        if Mp == B and Np == out_f:
            return out
        return out[:B, :out_f]

    return apply


# ---------------------------------------------------------------------------
# Deterministic parameter / mask construction (mirrors AutoregLinear.__init__)
# ---------------------------------------------------------------------------
def make_autoreg_linear_params(key, num_vars, inp_per_var, out_per_var,
                               diagonal=False, no_act_fn_init=False,
                               init_std_factor=1.0, init_bias_factor=1.0,
                               init_first_block_zeros=False):
    in_f = num_vars * inp_per_var
    out_f = num_vars * out_per_var

    k_w, k_b, k_blocks = jax.random.split(key, 3)

    # nn.Linear default init: bound = 1/sqrt(fan_in)
    w_bound = 1.0 / math.sqrt(in_f)
    weight = jax.random.uniform(k_w, (out_f, in_f), jnp.float32,
                                minval=-w_bound, maxval=w_bound)
    b_bound = 1.0 / math.sqrt(in_f)
    bias = jax.random.uniform(k_b, (out_f,), jnp.float32,
                              minval=-b_bound, maxval=b_bound)

    # kaiming_uniform_ gain: default -> leaky_relu a=0; no_act_fn_init -> a=1.0
    a = 1.0 if no_act_fn_init else 0.0
    gain = math.sqrt(2.0 / (1.0 + a * a))

    mask = jnp.zeros((out_f, in_f), jnp.float32)
    block_keys = jax.random.split(k_blocks, num_vars)
    for out_var in range(num_vars):
        out_start = out_var * out_per_var
        out_end = (out_var + 1) * out_per_var
        inp_end = (out_var + (1 if diagonal else 0)) * inp_per_var
        if inp_end > 0:
            mask = mask.at[out_start:out_end, :inp_end].set(1.0)
            if out_var == 0 and init_first_block_zeros:
                block = jnp.zeros((out_per_var, inp_end), jnp.float32)
            else:
                fan_in = inp_end
                bound = gain * math.sqrt(3.0 / fan_in)
                block = jax.random.uniform(block_keys[out_var],
                                           (out_per_var, inp_end), jnp.float32,
                                           minval=-bound, maxval=bound)
            weight = weight.at[out_start:out_end, :inp_end].set(block)

    weight = weight * init_std_factor
    bias = bias * init_bias_factor
    return weight, mask, bias


if __name__ == "__main__":
    # Small, module-consistent shapes.
    num_vars, inp_per_var, out_per_var = 8, 4, 4   # in_f = out_f = 32
    batch = 8

    key = jax.random.PRNGKey(0)
    k_params, k_x = jax.random.split(key)

    weight, mask, bias = make_autoreg_linear_params(
        k_params, num_vars, inp_per_var, out_per_var, diagonal=False)
    x = jax.random.normal(k_x, (batch, num_vars * inp_per_var), jnp.float32)

    # Pure-JAX reference (F.linear semantics: x @ (W*mask).T + b)
    y_ref = x @ (weight * mask).T + bias

    # f32 compute path: exact structural check of the kernel.
    f32_fwd = build_autoreg_linear(
        weight, mask, bias, inp_per_var=inp_per_var, out_per_var=out_per_var,
        diagonal=False, compute_dtype=jnp.float32, batch_hint=batch)
    y32 = jax.block_until_ready(jax.jit(f32_fwd)(x))
    assert y32.shape == (batch, num_vars * out_per_var)
    assert jnp.allclose(y32, y_ref, atol=1e-4, rtol=1e-4)

    # bf16 compute (MXU-native) with f32 accumulation: relaxed tolerance.
    # (Explicit opt-in if bit-level parity with the f32 PyTorch module is needed.)
    bf16_fwd = build_autoreg_linear(
        weight, mask, bias, inp_per_var=inp_per_var, out_per_var=out_per_var,
        diagonal=False, compute_dtype=jnp.bfloat16, batch_hint=batch)
    y16 = jax.block_until_ready(jax.jit(bf16_fwd)(x))
    assert y16.shape == (batch, num_vars * out_per_var)
    assert jnp.allclose(y16, y_ref, atol=5e-2, rtol=5e-2)

    print("KERNEL_OK")
</pallas_src>

<mosaic_0001>
module attributes {stable_mosaic.version = 11 : i64} {
  func.func @_autoreg_linear_kernel(%arg0: i32, %arg1: i32, %arg2: memref<1xi32, #tpu.memory_space<smem>>, %arg3: memref<1xi32, #tpu.memory_space<smem>>, %arg4: memref<1xi32, #tpu.memory_space<smem>>, %arg5: memref<1xi32, #tpu.memory_space<smem>>, %arg6: memref<8x128xf32, #tpu.memory_space<vmem>>, %arg7: memref<128x128xf32, #tpu.memory_space<vmem>>, %arg8: memref<1x128xf32, #tpu.memory_space<vmem>>, %arg9: memref<8x128xf32, #tpu.memory_space<vmem>>, %arg10: memref<8x128xf32, #tpu.memory_space<vmem>>) attributes {dimension_semantics = [#tpu.dimension_semantics<parallel>, #tpu.dimension_semantics<arbitrary>], iteration_bounds = array<i64: 1, 1>, scalar_prefetch = 4 : i64, scratch_operands = 1 : i64, tpu.core_type = #tpu.core_type<tc>, window_params = [{transform_indices = @transform_0, window_bounds = array<i64: 8, 128>}, {transform_indices = @transform_1, window_bounds = array<i64: 128, 128>}, {transform_indices = @transform_2, window_bounds = array<i64: 1, 128>}, {transform_indices = @transform_3, window_bounds = array<i64: 8, 128>}]} {
    %0 = arith.index_cast %arg1 : i32 to index
    %1 = memref.load %arg4[%0] : memref<1xi32, #tpu.memory_space<smem>>
    %c1_i32 = arith.constant 1 : i32
    %2 = arith.cmpi eq, %1, %c1_i32 : i32
    %3 = arith.extui %2 : i1 to i32
    %c0_i32 = arith.constant 0 : i32
    %4 = arith.cmpi ne, %3, %c0_i32 : i32
    scf.if %4 {
      %cst_9 = arith.constant 0.000000e+00 : f32
      %16 = vector.broadcast %cst_9 : f32 to vector<8x128xf32>
      %c0_10 = arith.constant 0 : index
      %c0_11 = arith.constant 0 : index
      %17 = vector.load %arg10[%c0_10, %c0_11] : memref<8x128xf32, #tpu.memory_space<vmem>>, vector<8x128xf32>
      tpu.vector_store %arg10[%c0_10, %c0_11], %16 {strides = array<i32>} : memref<8x128xf32, #tpu.memory_space<vmem>>, vector<8x128xf32>,
    } else {
    }
    %c0 = arith.constant 0 : index
    %c0_0 = arith.constant 0 : index
    %5 = vector.load %arg10[%c0, %c0_0] : memref<8x128xf32, #tpu.memory_space<vmem>>, vector<8x128xf32>
    %c0_1 = arith.constant 0 : index
    %c0_2 = arith.constant 0 : index
    %6 = vector.load %arg6[%c0_1, %c0_2] : memref<8x128xf32, #tpu.memory_space<vmem>>, vector<8x128xf32>
    %c0_3 = arith.constant 0 : index
    %c0_4 = arith.constant 0 : index
    %7 = vector.load %arg7[%c0_3, %c0_4] : memref<128x128xf32, #tpu.memory_space<vmem>>, vector<128x128xf32>
    %cst = arith.constant dense<0.000000e+00> : vector<8x128xf32>
    %8 = tpu.matmul %6, %7, %cst {dimension_numbers = #tpu.dot_dimension_numbers<[1], [0], [0], [1], [0, 0, 1, 1], [], []>} : vector<8x128xf32>, vector<128x128xf32>, vector<8x128xf32> -> vector<8x128xf32>
    %9 = arith.addf %5, %8 : vector<8x128xf32>
    %c0_5 = arith.constant 0 : index
    %c0_6 = arith.constant 0 : index
    %10 = vector.load %arg10[%c0_5, %c0_6] : memref<8x128xf32, #tpu.memory_space<vmem>>, vector<8x128xf32>
    tpu.vector_store %arg10[%c0_5, %c0_6], %9 {strides = array<i32>} : memref<8x128xf32, #tpu.memory_space<vmem>>, vector<8x128xf32>,
    %11 = arith.index_cast %arg1 : i32 to index
    %12 = memref.load %arg5[%11] : memref<1xi32, #tpu.memory_space<smem>>
    %c1_i32_7 = arith.constant 1 : i32
    %13 = arith.cmpi eq, %12, %c1_i32_7 : i32
    %14 = arith.extui %13 : i1 to i32
    %c0_i32_8 = arith.constant 0 : i32
    %15 = arith.cmpi ne, %14, %c0_i32_8 : i32
    scf.if %15 {
      %c0_9 = arith.constant 0 : index
      %c0_10 = arith.constant 0 : index
      %16 = vector.load %arg10[%c0_9, %c0_10] : memref<8x128xf32, #tpu.memory_space<vmem>>, vector<8x128xf32>
      %c0_11 = arith.constant 0 : index
      %c0_12 = arith.constant 0 : index
      %17 = vector.load %arg8[%c0_11, %c0_12] : memref<1x128xf32, #tpu.memory_space<vmem>>, vector<1x128xf32>
      %18 = vector.broadcast %17 : vector<1x128xf32> to vector<8x128xf32>
      %19 = arith.addf %16, %18 : vector<8x128xf32>
      %c0_13 = arith.constant 0 : index
      %c0_14 = arith.constant 0 : index
      %20 = vector.load %arg9[%c0_13, %c0_14] : memref<8x128xf32, #tpu.memory_space<vmem>>, vector<8x128xf32>
      tpu.vector_store %arg9[%c0_13, %c0_14], %19 {strides = array<i32>} : memref<8x128xf32, #tpu.memory_space<vmem>>, vector<8x128xf32>,
    } else {
    }
    return
  }
  func.func @transform_0(%arg0: i32, %arg1: i32, %arg2: memref<1xi32, #tpu.memory_space<smem>>, %arg3: memref<1xi32, #tpu.memory_space<smem>>, %arg4: memref<1xi32, #tpu.memory_space<smem>>, %arg5: memref<1xi32, #tpu.memory_space<smem>>) -> (i32, i32) {
    %0 = arith.index_cast %arg1 : i32 to index
    %1 = memref.load %arg3[%0] : memref<1xi32, #tpu.memory_space<smem>>
    %c0_i32 = arith.constant 0 : i32
    return %arg0, %1 : i32, i32
  }
  func.func @transform_1(%arg0: i32, %arg1: i32, %arg2: memref<1xi32, #tpu.memory_space<smem>>, %arg3: memref<1xi32, #tpu.memory_space<smem>>, %arg4: memref<1xi32, #tpu.memory_space<smem>>, %arg5: memref<1xi32, #tpu.memory_space<smem>>) -> (i32, i32) {
    %0 = arith.index_cast %arg1 : i32 to index
    %1 = memref.load %arg3[%0] : memref<1xi32, #tpu.memory_space<smem>>
    %2 = arith.index_cast %arg1 : i32 to index
    %3 = memref.load %arg2[%2] : memref<1xi32, #tpu.memory_space<smem>>
    %c0_i32 = arith.constant 0 : i32
    return %1, %3 : i32, i32
  }
  func.func @transform_2(%arg0: i32, %arg1: i32, %arg2: memref<1xi32, #tpu.memory_space<smem>>, %arg3: memref<1xi32, #tpu.memory_space<smem>>, %arg4: memref<1xi32, #tpu.memory_space<smem>>, %arg5: memref<1xi32, #tpu.memory_space<smem>>) -> (i32, i32) {
    %0 = arith.index_cast %arg1 : i32 to index
    %1 = memref.load %arg2[%0] : memref<1xi32, #tpu.memory_space<smem>>
    %c0_i32 = arith.constant 0 : i32
    %c0_i32_0 = arith.constant 0 : i32
    return %c0_i32, %1 : i32, i32
  }
  func.func @transform_3(%arg0: i32, %arg1: i32, %arg2: memref<1xi32, #tpu.memory_space<smem>>, %arg3: memref<1xi32, #tpu.memory_space<smem>>, %arg4: memref<1xi32, #tpu.memory_space<smem>>, %arg5: memref<1xi32, #tpu.memory_space<smem>>) -> (i32, i32) {
    %0 = arith.index_cast %arg1 : i32 to index
    %1 = memref.load %arg2[%0] : memref<1xi32, #tpu.memory_space<smem>>
    %c0_i32 = arith.constant 0 : i32
    return %arg0, %1 : i32, i32
  }
}

</mosaic_0001>

<llo_original>
// kernel: apply.1
$region0: #{apply.1}
  #allocation0 [shape = 'u32[]', space=smem, size = 0x4, offset = 0x4, fixed_abs, tag = 'smem constant byte address 0x4 - core index']
  #allocation1 [shape = 'u32[72,128]{1,0:T(1,128)}', space=vmem, size = 0x9000, scoped, tag = 'internal scratch']
  #allocation2 [shape = 'f32[8,128]{1,0:T(8,128)}', space=vmem, size = 0x1000, scoped, tag = 'scratch operand']
  #allocation3 [shape = 's32[1]{0}', space=sflag, size = 0x4, scoped, tag = 'scoped memory for apply.1']
  #allocation4 [shape = 's32[1]{0:T(128)S(6)}', space=smem, size = 0x200, scoped, tag = 'prefetched SMEM operand 0']
  #allocation5 [shape = 's32[1]{0:T(128)S(6)}', space=smem, size = 0x200, scoped, tag = 'prefetched SMEM operand 1']
  #allocation6 [shape = 's32[1]{0:T(128)S(6)}', space=smem, size = 0x200, scoped, tag = 'prefetched SMEM operand 2']
  #allocation7 [shape = 's32[1]{0:T(128)S(6)}', space=smem, size = 0x200, scoped, tag = 'prefetched SMEM operand 3']
  %s0 = inlined_call_operand.<no memory space> [shape: s32[1], index: 0, kind: input, shape index: {}, may-alias: {0,1}]
  %s1 = inlined_call_operand.<no memory space> [shape: s32[1], index: 1, kind: input, shape index: {}, may-alias: {0,1}]
  %s2 = inlined_call_operand.<no memory space> [shape: s32[1], index: 2, kind: input, shape index: {}, may-alias: {2,3}]
  %s3 = inlined_call_operand.<no memory space> [shape: s32[1], index: 3, kind: input, shape index: {}, may-alias: {2,3}]
  %s4 = inlined_call_operand.vmem [shape: f32[8,128], index: 4, kind: input, shape index: {}]
  %s5 = inlined_call_operand.hbm [shape: f32[128,128], index: 5, kind: input, shape index: {}]
  %s6 = inlined_call_operand.vmem [shape: f32[1,128], index: 6, kind: input, shape index: {}]
  %s7 = inlined_call_operand.hbm [shape: f32[8,128], index: 7, kind: output, shape index: {}]
  %s8 = sld [smem:[#allocation0]]
  $region34: #{apply.1} parent=0
    _
  %s10 = ssub.s32 1, %s8
  %s11 = scalar_select 0, %s10, %s8
  %12 = sst [smem:[#allocation4]] %s0
  %13 = sst [smem:[#allocation5]] %s1
  %14 = sst [smem:[#allocation6]] %s2
  %15 = sst [smem:[#allocation7]] %s3
  $region1: #{apply.1} parent=0
    #allocation8 [shape = 'u8[65536]{0}', space=vmem, size = 0x10000, scoped, tag = 'input window, operand 5, single buffered']
    #allocation9 [shape = 's32[1]{0}', space=sflag, size = 0x4, scoped, tag = 'scoped memory for apply.1']
    #allocation10 [shape = 's32[1]{0}', space=sflag, size = 0x4, scoped, tag = 'scoped memory for apply.1']
    #allocation11 [shape = 'u8[4096]{0}', space=vmem, size = 0x1000, scoped, tag = 'output window, operand 0, single buffered']
    %16 = vsyncpa [#allocation9], 0
    %17 = vsyncpa [#allocation10], 0
    // Predicated region
    $region2: #{apply.1} parent=1 // pred_check
      _
    $region3: #{apply.1} parent=1 // pred_check_branch
      %19 = sbr.rel (0) target = $region5
    $region4: #{apply.1} parent=1 // pred_region
      %s20 = sld [smem:[#allocation5]]
      %p21 = scmp.lt.s32.totalorder %s20, 0
      %s22 = scalar_select %p21, %s20, 0
      %s23 = smul.addr %s22, 8
      %s24 = scalar_lea.vmem %s4, %s23
      %s25 = sld [smem:[#allocation5]]
    $region5: #{apply.1} parent=1 // pred_fallthru
      _
    // Predicated region
    $region6: #{apply.1} parent=1 // pred_check
      _
    $region7: #{apply.1} parent=1 // pred_check_branch
      %27 = sbr.rel (0) target = $region9
    $region8: #{apply.1} parent=1 // pred_region
      %s28 = sld [smem:[#allocation5]]
      %s29 = sld [smem:[#allocation4]]
      %s30 = smul.u32 16, %s28
      %32 = vsyncadd [#allocation9], 0
      %s33 = sadd.s32 %s29, %s30
      %s34 = smul.addr %s33, 8
      %s35 = scalar_lea.hbm %s5, %s34
      %s36 = sshll.u32 %s35, 4
      %s37 = int_to_ptr.hbm [resolvable:$true] %s36
      %s38 = sshll.u32 [#allocation8], 4
      %s39 = int_to_ptr.vmem [resolvable:$true] %s38
      %44 = dma.hbm_to_vmem [thread:$0]  %s37, 2048, %s39, [#allocation9], 128, 128, 8
    $region9: #{apply.1} parent=1 // pred_fallthru
      _
    // Predicated region
    $region10: #{apply.1} parent=1 // pred_check
      _
    $region11: #{apply.1} parent=1 // pred_check_branch
      %46 = sbr.rel (0) target = $region13
    $region12: #{apply.1} parent=1 // pred_region
      %s47 = sld [smem:[#allocation4]]
      %p48 = scmp.lt.s32.totalorder %s47, 0
      %s49 = scalar_select %p48, %s47, 0
      %s50 = scalar_lea.vmem %s6, %s49
      %s51 = sld [smem:[#allocation4]]
    $region13: #{apply.1} parent=1 // pred_fallthru
      _
    // Predicated region
    $region14: #{apply.1} parent=1 // pred_check
      _
    $region15: #{apply.1} parent=1 // pred_check_branch
      %53 = sbr.rel (0) target = $region17
    $region16: #{apply.1} parent=1 // pred_region
      %55 = dma.done [#allocation9], 2048
    $region17: #{apply.1} parent=1 // pred_fallthru
      _
    %s56 = sld [smem:[#allocation5]]
    %p57 = scmp.lt.s32.totalorder %s56, 0
    %s58 = scalar_select %p57, %s56, 0
    %s59 = smul.addr %s58, 8
    %s60 = scalar_lea.vmem %s4, %s59
    %s61 = sld [smem:[#allocation4]]
    %p62 = scmp.lt.s32.totalorder %s61, 0
    %s63 = scalar_select %p62, %s61, 0
    %s64 = scalar_lea.vmem %s6, %s63
    %s65 = sld [smem:[#allocation5]]
    %p66 = scmp.lt.s32.totalorder %s65, 0
    %s67 = scalar_select %p66, %s65, 0
    %s68 = smul.addr %s67, 8
    %s69 = scalar_lea.vmem %s4, %s68
    %s70 = sld [smem:[#allocation5]]
    %s71 = sld [smem:[#allocation5]]
    %s72 = sld [smem:[#allocation4]]
    %s73 = smul.u32 16, %s71
    %s74 = sld [smem:[#allocation4]]
    %p75 = scmp.lt.s32.totalorder %s74, 0
    %s76 = scalar_select %p75, %s74, 0
    %s77 = scalar_lea.vmem %s6, %s76
    %s78 = sld [smem:[#allocation4]]
    %s79 = sld [smem:[#allocation4]]
    %s80 = sld [smem:[#allocation6]]
    %p81 = scmp.eq.s32.totalorder %s80, 1
    // Predicated region
    $region18: #{apply.1} parent=1 // pred_check
      %p82 = pneg %p81
    $region19: #{apply.1} parent=1 // pred_check_branch
      %84 = sbr.rel (%p82) target = $region21
    $region20: #{apply.1} parent=1 // pred_region
      %85 = vst [vmem:[#allocation2] sm:$0xff] 0.0
    $region21: #{apply.1} parent=1 // pred_fallthru
      _
    %v86 = vld [vmem:[#allocation2] sm:$0xff]
    %v87 = vld [vmem:[%s69] sm:$0xff]
    %v88 = vld [vmem:[#allocation8] sm:$0xff]
    %v89 = vld [vmem:[#allocation8 + $0x8] sm:$0xff]
    %v90 = vld [vmem:[#allocation8 + $0x10] sm:$0xff]
    %v91 = vld [vmem:[#allocation8 + $0x18] sm:$0xff]
    %v92 = vld [vmem:[#allocation8 + $0x20] sm:$0xff]
    %v93 = vld [vmem:[#allocation8 + $0x28] sm:$0xff]
    %v94 = vld [vmem:[#allocation8 + $0x30] sm:$0xff]
    %v95 = vld [vmem:[#allocation8 + $0x38] sm:$0xff]
    %v96 = vld [vmem:[#allocation8 + $0x40] sm:$0xff]
    %v97 = vld [vmem:[#allocation8 + $0x48] sm:$0xff]
    %v98 = vld [vmem:[#allocation8 + $0x50] sm:$0xff]
    %v99 = vld [vmem:[#allocation8 + $0x58] sm:$0xff]
    %v100 = vld [vmem:[#allocation8 + $0x60] sm:$0xff]
    %v101 = vld [vmem:[#allocation8 + $0x68] sm:$0xff]
    %v102 = vld [vmem:[#allocation8 + $0x70] sm:$0xff]
    %v103 = vld [vmem:[#allocation8 + $0x78] sm:$0xff]
    %104 = vmatpush.msra.mxu0 %v103
    %105 = vmatpush.msra.mxu0 %v102
    %106 = vmatpush.msra.mxu0 %v101
    %107 = vmatpush.msra.mxu0 %v100
    %108 = vmatpush.msra.mxu0 %v99
    %109 = vmatpush.msra.mxu0 %v98
    %110 = vmatpush.msra.mxu0 %v97
    %111 = vmatpush.msra.mxu0 %v96
    %112 = vmatpush.msra.mxu0 %v95
    %113 = vmatpush.msra.mxu0 %v94
    %114 = vmatpush.msra.mxu0 %v93
    %115 = vmatpush.msra.mxu0 %v92
    %116 = vmatpush.msra.mxu0 %v91
    %117 = vmatpush.msra.mxu0 %v90
    %118 = vmatpush.msra.mxu0 %v89
    %119 = vmatpush.msra.mxu0 %v88
    %120 = vmatmul.f32.gmra.mxu0 %v87
    %v121 = vpop.f32.mrf.mxu0
    %v122 = vadd.f32 0.0, %v121
    %123 = vdwg.mxu0
    %v124 = vadd.f32 %v86, %v122
    %125 = vst [vmem:[#allocation2] sm:$0xff] %v124
    %s126 = sld [smem:[#allocation7]]
    %p127 = scmp.eq.s32.totalorder %s126, 1
    // Predicated region
    $region22: #{apply.1} parent=1 // pred_check
      %p128 = pneg %p127
    $region23: #{apply.1} parent=1 // pred_check_branch
      %130 = sbr.rel (%p128) target = $region25
    $region24: #{apply.1} parent=1 // pred_region
      %v131 = vld [vmem:[#allocation2] sm:$0xff]
      %v132 = vld [vmem:[%s77] sm:$0x1]
      %v134 = vperm.slane %v132, 0
      %v136 = vadd.f32 %v131, %v134
      %137 = vst [vmem:[#allocation11] sm:$0xff] %v136
    $region25: #{apply.1} parent=1 // pred_fallthru
      _
    // Predicated region
    $region26: #{apply.1} parent=1 // pred_check
      _
    $region27: #{apply.1} parent=1 // pred_check_branch
      %139 = sbr.rel (0) target = $region29
    $region28: #{apply.1} parent=1 // pred_region
      %s140 = sld [smem:[#allocation4]]
      %142 = vsyncadd [#allocation10], 0
      %s143 = smul.addr %s140, 8
      %s144 = scalar_lea.hbm %s7, %s143
      %s146 = sshll.u32 [#allocation11], 4
      %s147 = int_to_ptr.vmem [resolvable:$true] %s146
      %s148 = sshll.u32 %s144, 4
      %s149 = int_to_ptr.hbm [resolvable:$true] %s148
      %151 = dma.vmem_to_hbm [thread:$0]  %s147, 128, %s149, [#allocation10]
    $region29: #{apply.1} parent=1 // pred_fallthru
      _
    // Predicated region
    $region30: #{apply.1} parent=1 // pred_check
      _
    $region31: #{apply.1} parent=1 // pred_check_branch
      %153 = sbr.rel (0) target = $region33
    $region32: #{apply.1} parent=1 // pred_region
      %155 = dma.done [#allocation10], 128
    $region33: #{apply.1} parent=1 // pred_fallthru
      _
    %156 = vsyncpa [#allocation9], 1
    %157 = vsyncpa [#allocation10], 1

</llo_original>
